<compile_context>
chip_gen: v6e
topology: v6e:2x2x1
jax: 0.10.0
libtpu: 0.0.40
codegen_flags: <defaults>
</compile_context>

<pallas_src>
import jax
import jax.numpy as jnp
from jax.experimental import pallas as pl
from jax.experimental.pallas import tpu as pltpu


def _round_up(x, m):
    return (x + m - 1) // m * m


def _cdiv(a, b):
    return (a + b - 1) // b


def _decoder_kernel(z_ref, w1_ref, b1_ref, w2_ref, b2_ref, w3_ref, b3_ref, o_ref):
    # One (TB, L) batch tile of z; all three Linear layers + ReLUs fused.
    # z and weights are bf16 MXU operands; accumulation / bias / ReLU stay f32.
    z = z_ref[...]
    h1 = jnp.dot(z, w1_ref[...], preferred_element_type=jnp.float32) + b1_ref[...]
    h1 = jnp.maximum(h1, 0.0)
    h2 = jnp.dot(h1.astype(jnp.bfloat16), w2_ref[...],
                 preferred_element_type=jnp.float32) + b2_ref[...]
    h2 = jnp.maximum(h2, 0.0)
    x_r = jnp.dot(h2.astype(jnp.bfloat16), w3_ref[...],
                  preferred_element_type=jnp.float32) + b3_ref[...]
    o_ref[...] = x_r.astype(o_ref.dtype)


def prepare_params(params):
    """One-time prep: bf16 weights (MXU operands), f32 (1, H) biases.

    Call once and reuse across forward calls so no cast/pad HLOs (and their HBM
    round-trips) sit in the hot path of this latency-bound op.
    """
    return {
        "w1": params["w1"].astype(jnp.bfloat16),
        "w2": params["w2"].astype(jnp.bfloat16),
        "w3": params["w3"].astype(jnp.bfloat16),
        "b1": params["b1"].reshape(1, -1).astype(jnp.float32),
        "b2": params["b2"].reshape(1, -1).astype(jnp.float32),
        "b3": params["b3"].reshape(1, -1).astype(jnp.float32),
        "_prepared": True,
    }


def _choose_batch_tile(B, L, H1, H2, D, tb_max=2048):
    # Spread the batch over equal tiles (minimizes tail padding), and give v7x's
    # two TensorCores at least two grid steps when the batch is big enough to
    # amortize the extra per-step overhead on single-TC chips.
    n_tiles = _cdiv(B, tb_max)
    if n_tiles == 1 and B >= 256:
        n_tiles = 2
    TB = _round_up(_cdiv(B, n_tiles), 8)

    def working_set(tb):
        stream = 2 * (tb * L * 2 + tb * D * 4)            # double-buffered z (bf16) + out (f32)
        weights = 2 * (2 * (L * H1 + H1 * H2 + H2 * D)    # bf16 weights (default 2 buffers)
                       + 4 * (H1 + H2 + D))               # f32 biases
        inter = tb * (H1 + H2 + D) * 4                    # f32 intermediates
        return stream + weights + inter

    VMEM_BUDGET = 24 * 1024 * 1024  # under the explicit 32 MiB vmem_limit_bytes on all gens
    while TB > 8 and working_set(TB) > VMEM_BUDGET:
        TB = max(8, _round_up(TB // 2, 8))
    return TB


def normal_decoder_forward(z, x, params, *, batch_tile=None):
    """Pallas implementation of NormalDecoder.forward(z, x) -> x_r.

    `x` is accepted for signature parity with the PyTorch module but unused,
    exactly as in the reference forward().  `params` may be raw (f32) or the
    output of prepare_params(); prepared params avoid per-call cast traffic.
    """
    del x  # unused in the reference forward pass
    if not params.get("_prepared", False):
        params = prepare_params(params)
    w1, w2, w3 = params["w1"], params["w2"], params["w3"]
    b1, b2, b3 = params["b1"], params["b2"], params["b3"]

    B, L = z.shape
    H1, H2, D = w1.shape[1], w2.shape[1], w3.shape[1]
    out_dtype = z.dtype

    TB = batch_tile if batch_tile is not None else _choose_batch_tile(B, L, H1, H2, D)
    TB = _round_up(TB, 8)
    Bp = _round_up(max(B, TB), TB)

    # Stream z in bf16 (halves input HBM/DMA bytes); only the batch axis is padded.
    zb = z.astype(jnp.bfloat16)
    if Bp != B:
        zb = jnp.zeros((Bp, L), jnp.bfloat16).at[:B].set(zb)

    grid = (Bp // TB,)
    # Weights / biases: constant block index -> resident in VMEM, no per-step DMA.
    resident = lambda shape: pl.BlockSpec(shape, lambda i: (0, 0))

    flops = 2 * B * (L * H1 + H1 * H2 + H2 * D)
    bytes_accessed = (
        zb.size * 2                                    # bf16 z stream
        + 2 * (w1.size + w2.size + w3.size)            # bf16 weights
        + 4 * (b1.size + b2.size + b3.size)            # f32 biases
        + Bp * D * jnp.dtype(out_dtype).itemsize       # output (unpadded lanes)
    )

    out = pl.pallas_call(
        _decoder_kernel,
        out_shape=jax.ShapeDtypeStruct((Bp, D), out_dtype),
        grid_spec=pl.GridSpec(
            grid=grid,
            in_specs=[
                pl.BlockSpec((TB, L), lambda i: (i, 0)),   # z: streamed per batch tile
                resident((L, H1)), resident((1, H1)),
                resident((H1, H2)), resident((1, H2)),
                resident((H2, D)), resident((1, D)),
            ],
            out_specs=pl.BlockSpec((TB, D), lambda i: (i, 0)),
        ),
        compiler_params=pltpu.CompilerParams(
            dimension_semantics=("parallel",),             # megacore-shard the batch axis (v7x)
            vmem_limit_bytes=32 * 1024 * 1024,
        ),
        cost_estimate=pl.CostEstimate(
            flops=int(flops), transcendentals=0, bytes_accessed=int(bytes_accessed)
        ),
    )(zb, w1, b1, w2, b2, w3, b3)

    return out if Bp == B else out[:B]


def init_params(key, latent_dim, input_dim, h1_dim, h2_dim, dtype=jnp.float32):
    """Deterministic init mimicking nn.Linear's U(-1/sqrt(fan_in), 1/sqrt(fan_in)).

    Weights stored [in_dim, out_dim] (transposed vs. PyTorch) for row-major matmul.
    """
    def linear(k, fan_in, fan_out):
        kw, kb = jax.random.split(k)
        bound = 1.0 / (fan_in ** 0.5)
        w = jax.random.uniform(kw, (fan_in, fan_out), dtype, -bound, bound)
        b = jax.random.uniform(kb, (1, fan_out), dtype, -bound, bound)
        return w, b

    k1, k2, k3 = jax.random.split(key, 3)
    w1, b1 = linear(k1, latent_dim, h1_dim)
    w2, b2 = linear(k2, h1_dim, h2_dim)
    w3, b3 = linear(k3, h2_dim, input_dim)
    return {"w1": w1, "b1": b1, "w2": w2, "b2": b2, "w3": w3, "b3": b3}


def _reference_forward(z, params):
    """JAX reference with the same bf16-operand / f32-accumulate matmuls."""
    bf16, f32 = jnp.bfloat16, jnp.float32
    h1 = jax.nn.relu(
        jnp.dot(z.astype(bf16), params["w1"].astype(bf16),
                preferred_element_type=f32) + params["b1"])
    h2 = jax.nn.relu(
        jnp.dot(h1.astype(bf16), params["w2"].astype(bf16),
                preferred_element_type=f32) + params["b2"])
    return (jnp.dot(h2.astype(bf16), params["w3"].astype(bf16),
                    preferred_element_type=f32) + params["b3"]).astype(z.dtype)


if __name__ == "__main__":
    # Small shapes consistent with NormalDecoder(latent_dim, input_dim, h1_dim, h2_dim)
    B, latent_dim, input_dim, h1_dim, h2_dim = 8, 16, 32, 64, 48

    key = jax.random.PRNGKey(0)
    kz, kx, kp = jax.random.split(key, 3)
    z = jax.random.normal(kz, (B, latent_dim), jnp.float32)
    x = jax.random.normal(kx, (B, input_dim), jnp.float32)  # unused, as in the reference
    params = init_params(kp, latent_dim, input_dim, h1_dim, h2_dim)
    prepared = prepare_params(params)  # cast/reshape once; reuse every forward

    x_r = jax.block_until_ready(normal_decoder_forward(z, x, prepared))
    ref = jax.block_until_ready(_reference_forward(z, params))

    assert x_r.shape == (B, input_dim)
    assert x_r.dtype == z.dtype
    assert jnp.allclose(x_r, ref, atol=1e-2, rtol=1e-2), "mismatch vs JAX reference"

    print("KERNEL_OK")
</pallas_src>

<mosaic_0001>
module attributes {stable_mosaic.version = 11 : i64} {
  func.func @_decoder_kernel(%arg0: i32, %arg1: memref<8x16xbf16, #tpu.memory_space<vmem>>, %arg2: memref<16x64xbf16, #tpu.memory_space<vmem>>, %arg3: memref<1x64xf32, #tpu.memory_space<vmem>>, %arg4: memref<64x48xbf16, #tpu.memory_space<vmem>>, %arg5: memref<1x48xf32, #tpu.memory_space<vmem>>, %arg6: memref<48x32xbf16, #tpu.memory_space<vmem>>, %arg7: memref<1x32xf32, #tpu.memory_space<vmem>>, %arg8: memref<8x32xf32, #tpu.memory_space<vmem>>) attributes {dimension_semantics = [#tpu.dimension_semantics<parallel>], iteration_bounds = array<i64: 1>, scalar_prefetch = 0 : i64, scratch_operands = 0 : i64, tpu.core_type = #tpu.core_type<tc>, window_params = [{transform_indices = @transform_0, window_bounds = array<i64: 8, 16>}, {pipeline_mode = #tpu.pipeline_mode<synchronous>, transform_indices = @transform_1, window_bounds = array<i64: 16, 64>}, {pipeline_mode = #tpu.pipeline_mode<synchronous>, transform_indices = @transform_2, window_bounds = array<i64: 1, 64>}, {pipeline_mode = #tpu.pipeline_mode<synchronous>, transform_indices = @transform_3, window_bounds = array<i64: 64, 48>}, {pipeline_mode = #tpu.pipeline_mode<synchronous>, transform_indices = @transform_4, window_bounds = array<i64: 1, 48>}, {pipeline_mode = #tpu.pipeline_mode<synchronous>, transform_indices = @transform_5, window_bounds = array<i64: 48, 32>}, {pipeline_mode = #tpu.pipeline_mode<synchronous>, transform_indices = @transform_6, window_bounds = array<i64: 1, 32>}, {transform_indices = @transform_7, window_bounds = array<i64: 8, 32>}]} {
    %c0 = arith.constant 0 : index
    %c0_0 = arith.constant 0 : index
    %0 = vector.load %arg1[%c0, %c0_0] : memref<8x16xbf16, #tpu.memory_space<vmem>>, vector<8x16xbf16>
    %c0_1 = arith.constant 0 : index
    %c0_2 = arith.constant 0 : index
    %1 = vector.load %arg2[%c0_1, %c0_2] : memref<16x64xbf16, #tpu.memory_space<vmem>>, vector<16x64xbf16>
    %cst = arith.constant dense<0.000000e+00> : vector<8x64xf32>
    %2 = tpu.matmul %0, %1, %cst {dimension_numbers = #tpu.dot_dimension_numbers<[1], [0], [0], [1], [0, 0, 1, 1], [], []>} : vector<8x16xbf16>, vector<16x64xbf16>, vector<8x64xf32> -> vector<8x64xf32>
    %c0_3 = arith.constant 0 : index
    %c0_4 = arith.constant 0 : index
    %3 = vector.load %arg3[%c0_3, %c0_4] : memref<1x64xf32, #tpu.memory_space<vmem>>, vector<1x64xf32>
    %4 = vector.broadcast %3 : vector<1x64xf32> to vector<8x64xf32>
    %5 = arith.addf %2, %4 : vector<8x64xf32>
    %cst_5 = arith.constant 0.000000e+00 : f32
    %6 = vector.broadcast %cst_5 : f32 to vector<8x64xf32>
    %7 = arith.maximumf %5, %6 : vector<8x64xf32>
    %8 = arith.truncf %7 : vector<8x64xf32> to vector<8x64xbf16>
    %c0_6 = arith.constant 0 : index
    %c0_7 = arith.constant 0 : index
    %9 = vector.load %arg4[%c0_6, %c0_7] : memref<64x48xbf16, #tpu.memory_space<vmem>>, vector<64x48xbf16>
    %cst_8 = arith.constant dense<0.000000e+00> : vector<8x48xf32>
    %10 = tpu.matmul %8, %9, %cst_8 {dimension_numbers = #tpu.dot_dimension_numbers<[1], [0], [0], [1], [0, 0, 1, 1], [], []>} : vector<8x64xbf16>, vector<64x48xbf16>, vector<8x48xf32> -> vector<8x48xf32>
    %c0_9 = arith.constant 0 : index
    %c0_10 = arith.constant 0 : index
    %11 = vector.load %arg5[%c0_9, %c0_10] : memref<1x48xf32, #tpu.memory_space<vmem>>, vector<1x48xf32>
    %12 = vector.broadcast %11 : vector<1x48xf32> to vector<8x48xf32>
    %13 = arith.addf %10, %12 : vector<8x48xf32>
    %cst_11 = arith.constant 0.000000e+00 : f32
    %14 = vector.broadcast %cst_11 : f32 to vector<8x48xf32>
    %15 = arith.maximumf %13, %14 : vector<8x48xf32>
    %16 = arith.truncf %15 : vector<8x48xf32> to vector<8x48xbf16>
    %c0_12 = arith.constant 0 : index
    %c0_13 = arith.constant 0 : index
    %17 = vector.load %arg6[%c0_12, %c0_13] : memref<48x32xbf16, #tpu.memory_space<vmem>>, vector<48x32xbf16>
    %cst_14 = arith.constant dense<0.000000e+00> : vector<8x32xf32>
    %18 = tpu.matmul %16, %17, %cst_14 {dimension_numbers = #tpu.dot_dimension_numbers<[1], [0], [0], [1], [0, 0, 1, 1], [], []>} : vector<8x48xbf16>, vector<48x32xbf16>, vector<8x32xf32> -> vector<8x32xf32>
    %c0_15 = arith.constant 0 : index
    %c0_16 = arith.constant 0 : index
    %19 = vector.load %arg7[%c0_15, %c0_16] : memref<1x32xf32, #tpu.memory_space<vmem>>, vector<1x32xf32>
    %20 = vector.broadcast %19 : vector<1x32xf32> to vector<8x32xf32>
    %21 = arith.addf %18, %20 : vector<8x32xf32>
    %c0_17 = arith.constant 0 : index
    %c0_18 = arith.constant 0 : index
    %22 = vector.load %arg8[%c0_17, %c0_18] : memref<8x32xf32, #tpu.memory_space<vmem>>, vector<8x32xf32>
    tpu.vector_store %arg8[%c0_17, %c0_18], %21 {strides = array<i32>} : memref<8x32xf32, #tpu.memory_space<vmem>>, vector<8x32xf32>,
    return
  }
  func.func @transform_0(%arg0: i32) -> (i32, i32) {
    %c0_i32 = arith.constant 0 : i32
    %c0_i32_0 = arith.constant 0 : i32
    return %arg0, %c0_i32 : i32, i32
  }
  func.func @transform_1(%arg0: i32) -> (i32, i32) {
    %c0_i32 = arith.constant 0 : i32
    %c0_i32_0 = arith.constant 0 : i32
    %c0_i32_1 = arith.constant 0 : i32
    return %c0_i32, %c0_i32_0 : i32, i32
  }
  func.func @transform_2(%arg0: i32) -> (i32, i32) {
    %c0_i32 = arith.constant 0 : i32
    %c0_i32_0 = arith.constant 0 : i32
    %c0_i32_1 = arith.constant 0 : i32
    return %c0_i32, %c0_i32_0 : i32, i32
  }
  func.func @transform_3(%arg0: i32) -> (i32, i32) {
    %c0_i32 = arith.constant 0 : i32
    %c0_i32_0 = arith.constant 0 : i32
    %c0_i32_1 = arith.constant 0 : i32
    return %c0_i32, %c0_i32_0 : i32, i32
  }
  func.func @transform_4(%arg0: i32) -> (i32, i32) {
    %c0_i32 = arith.constant 0 : i32
    %c0_i32_0 = arith.constant 0 : i32
    %c0_i32_1 = arith.constant 0 : i32
    return %c0_i32, %c0_i32_0 : i32, i32
  }
  func.func @transform_5(%arg0: i32) -> (i32, i32) {
    %c0_i32 = arith.constant 0 : i32
    %c0_i32_0 = arith.constant 0 : i32
    %c0_i32_1 = arith.constant 0 : i32
    return %c0_i32, %c0_i32_0 : i32, i32
  }
  func.func @transform_6(%arg0: i32) -> (i32, i32) {
    %c0_i32 = arith.constant 0 : i32
    %c0_i32_0 = arith.constant 0 : i32
    %c0_i32_1 = arith.constant 0 : i32
    return %c0_i32, %c0_i32_0 : i32, i32
  }
  func.func @transform_7(%arg0: i32) -> (i32, i32) {
    %c0_i32 = arith.constant 0 : i32
    %c0_i32_0 = arith.constant 0 : i32
    return %arg0, %c0_i32 : i32, i32
  }
}

</mosaic_0001>

<llo_original>
// kernel: tpu_custom_call.1
$region0: #{tpu_custom_call.1}
  #allocation0 [shape = 'u32[]', space=smem, size = 0x4, offset = 0x4, fixed_abs, tag = 'smem constant byte address 0x4 - core index']
  #allocation1 [shape = 'u32[144,128]{1,0:T(1,128)}', space=vmem, size = 0x12000, scoped, tag = 'internal scratch']
  %s0 = inlined_call_operand.vmem [shape: bf16[8,16], index: 0, kind: input, shape index: {}]
  %s1 = inlined_call_operand.vmem [shape: bf16[16,64], index: 1, kind: input, shape index: {}]
  %s2 = inlined_call_operand.vmem [shape: f32[1,64], index: 2, kind: input, shape index: {}]
  %s3 = inlined_call_operand.vmem [shape: bf16[64,48], index: 3, kind: input, shape index: {}]
  %s4 = inlined_call_operand.vmem [shape: f32[1,48], index: 4, kind: input, shape index: {}]
  %s5 = inlined_call_operand.vmem [shape: bf16[48,32], index: 5, kind: input, shape index: {}]
  %s6 = inlined_call_operand.vmem [shape: f32[1,32], index: 6, kind: input, shape index: {}]
  %s7 = inlined_call_operand.hbm [shape: f32[8,32], index: 7, kind: output, shape index: {}]
  %s8 = sld [smem:[#allocation0]]
  $region38: #{tpu_custom_call.1} parent=0
    _
  %s10 = ssub.s32 1, %s8
  %s11 = scalar_select 0, %s10, %s8
  $region1: #{tpu_custom_call.1} parent=0
    #allocation2 [shape = 'u8[4096]{0}', space=vmem, size = 0x1000, scoped, tag = 'output window, operand 0, single buffered']
    #allocation3 [shape = 's32[1]{0}', space=sflag, size = 0x4, scoped, tag = 'scoped memory for tpu_custom_call.1']
    %12 = vsyncpa [#allocation3], 0
    // Predicated region
    $region2: #{tpu_custom_call.1} parent=1 // pred_check
      _
    $region3: #{tpu_custom_call.1} parent=1 // pred_check_branch
      %14 = sbr.rel (0) target = $region5
    $region4: #{tpu_custom_call.1} parent=1 // pred_region
      _
    $region5: #{tpu_custom_call.1} parent=1 // pred_fallthru
      _
    // Predicated region
    $region6: #{tpu_custom_call.1} parent=1 // pred_check
      _
    $region7: #{tpu_custom_call.1} parent=1 // pred_check_branch
      %16 = sbr.rel (0) target = $region9
    $region8: #{tpu_custom_call.1} parent=1 // pred_region
      _
    $region9: #{tpu_custom_call.1} parent=1 // pred_fallthru
      _
    // Predicated region
    $region10: #{tpu_custom_call.1} parent=1 // pred_check
      _
    $region11: #{tpu_custom_call.1} parent=1 // pred_check_branch
      %18 = sbr.rel (0) target = $region13
    $region12: #{tpu_custom_call.1} parent=1 // pred_region
      _
    $region13: #{tpu_custom_call.1} parent=1 // pred_fallthru
      _
    // Predicated region
    $region14: #{tpu_custom_call.1} parent=1 // pred_check
      _
    $region15: #{tpu_custom_call.1} parent=1 // pred_check_branch
      %20 = sbr.rel (0) target = $region17
    $region16: #{tpu_custom_call.1} parent=1 // pred_region
      _
    $region17: #{tpu_custom_call.1} parent=1 // pred_fallthru
      _
    // Predicated region
    $region18: #{tpu_custom_call.1} parent=1 // pred_check
      _
    $region19: #{tpu_custom_call.1} parent=1 // pred_check_branch
      %22 = sbr.rel (0) target = $region21
    $region20: #{tpu_custom_call.1} parent=1 // pred_region
      _
    $region21: #{tpu_custom_call.1} parent=1 // pred_fallthru
      _
    // Predicated region
    $region22: #{tpu_custom_call.1} parent=1 // pred_check
      _
    $region23: #{tpu_custom_call.1} parent=1 // pred_check_branch
      %24 = sbr.rel (0) target = $region25
    $region24: #{tpu_custom_call.1} parent=1 // pred_region
      _
    $region25: #{tpu_custom_call.1} parent=1 // pred_fallthru
      _
    // Predicated region
    $region26: #{tpu_custom_call.1} parent=1 // pred_check
      _
    $region27: #{tpu_custom_call.1} parent=1 // pred_check_branch
      %26 = sbr.rel (0) target = $region29
    $region28: #{tpu_custom_call.1} parent=1 // pred_region
      _
    $region29: #{tpu_custom_call.1} parent=1 // pred_fallthru
      _
    %v28 = vld [vmem:[%s0] sm:$0xf]
    %v29 = vld [vmem:[%s1] sm:$0xf]
    %v30 = vld [vmem:[%s1 + $0x4] sm:$0xf]
    %v31 = vld [vmem:[%s2] sm:$0x1]
    %v33 = vlaneseq
    %v34 = vshrl.u32 %v33, 7
    %v35 = vsub.s32 0, %v34
    %v36 = vrot.slane %v31, %v35
    %v40 = vunpack.c.l.b16 %v29
    %v41 = vunpack.c.l.b16 %v30
    %v42 = vpack.c.b16 %v41, %v40
    %vm44 = vcmask 130048
    %v46 = vsel %vm44, %v28, 0
    %48 = vmatprep.subr.bf16.mxu0 0
    %49 = vmatpush1.bf16.msra.mxu0 0
    %50 = vmatprep.subr.bf16.mxu0 0
    %51 = vmatpush1.bf16.msra.mxu0 0
    %52 = vmatprep.subr.bf16.mxu0 0
    %53 = vmatpush1.bf16.msra.mxu0 0
    %54 = vmatprep.subr.bf16.mxu0 0
    %55 = vmatpush1.bf16.msra.mxu0 0
    %56 = vmatprep.subr.bf16.mxu0 0
    %57 = vmatpush1.bf16.msra.mxu0 0
    %58 = vmatprep.subr.bf16.mxu0 0
    %59 = vmatpush1.bf16.msra.mxu0 0
    %60 = vmatprep.subr.bf16.mxu0 0
    %61 = vmatpush1.bf16.msra.mxu0 0
    %62 = vmatprep.subr.bf16.mxu0 0
    %63 = vmatpush1.bf16.msra.mxu0 %v42
    %64 = vmatprep.subr.bf16.mxu0 0
    %65 = vmatpush2.bf16.msra.mxu0 0
    %66 = vmatprep.subr.bf16.mxu0 0
    %67 = vmatpush2.bf16.msra.mxu0 0
    %68 = vmatprep.subr.bf16.mxu0 0
    %69 = vmatpush2.bf16.msra.mxu0 0
    %70 = vmatprep.subr.bf16.mxu0 0
    %71 = vmatpush2.bf16.msra.mxu0 0
    %72 = vmatprep.subr.bf16.mxu0 0
    %73 = vmatpush2.bf16.msra.mxu0 0
    %74 = vmatprep.subr.bf16.mxu0 0
    %75 = vmatpush2.bf16.msra.mxu0 0
    %76 = vmatprep.subr.bf16.mxu0 0
    %77 = vmatpush2.bf16.msra.mxu0 0
    %78 = vmatprep.subr.bf16.mxu0 0
    %79 = vmatpush2.bf16.msra.mxu0 0
    %80 = vmatprep.mubr.bf16.mxu0 0
    %81 = vmatmul.mubr.bf16.gmra.mxu0 %v46
    %v82 = vpop.f32.mrf.mxu0
    %v83 = vadd.f32 %v36, %v82
    %v84 = vpop.f32.mrf.mxu0
    %v85 = vpop.f32.mrf.mxu0
    %v86 = vpop.f32.mrf.mxu0
    %87 = vdwg.mxu0
    %v88 = vmax.f32 %v83, 0.0
    %v89 = vpack.c.bf16 %v88, %v88
    %v90 = vld [vmem:[%s3] sm:$0xf]
    %v91 = vld [vmem:[%s3 + $0x4] sm:$0xf]
    %v92 = vld [vmem:[%s3 + $0x8] sm:$0xf]
    %v93 = vld [vmem:[%s3 + $0xc] sm:$0xf]
    %v94 = vld [vmem:[%s3 + $0x10] sm:$0xf]
    %v95 = vld [vmem:[%s3 + $0x14] sm:$0xf]
    %v96 = vld [vmem:[%s3 + $0x18] sm:$0xf]
    %v97 = vld [vmem:[%s3 + $0x1c] sm:$0xf]
    %v98 = vld [vmem:[%s4] sm:$0x1]
    %v100 = vlaneseq
    %v101 = vshrl.u32 %v100, 7
    %v102 = vsub.s32 0, %v101
    %v103 = vrot.slane %v98, %v102
    %v113 = vunpack.c.l.b16 %v90
    %v114 = vunpack.c.l.b16 %v91
    %v115 = vunpack.c.l.b16 %v92
    %v116 = vunpack.c.l.b16 %v93
    %v117 = vunpack.c.l.b16 %v94
    %v118 = vunpack.c.l.b16 %v95
    %v119 = vunpack.c.l.b16 %v96
    %v120 = vunpack.c.l.b16 %v97
    %v121 = vpack.c.b16 %v114, %v113
    %v122 = vpack.c.b16 %v116, %v115
    %v123 = vpack.c.b16 %v118, %v117
    %v124 = vpack.c.b16 %v120, %v119
    %vm129 = vcmask 523264
    %v131 = vsel %vm129, %v89, 0
    %133 = vmatprep.subr.bf16.mxu0 0
    %134 = vmatpush1.bf16.msra.mxu0 0
    %135 = vmatprep.subr.bf16.mxu0 0
    %136 = vmatpush1.bf16.msra.mxu0 0
    %137 = vmatprep.subr.bf16.mxu0 0
    %138 = vmatpush1.bf16.msra.mxu0 0
    %139 = vmatprep.subr.bf16.mxu0 0
    %140 = vmatpush1.bf16.msra.mxu0 0
    %141 = vmatprep.subr.bf16.mxu0 0
    %142 = vmatpush1.bf16.msra.mxu0 %v124
    %143 = vmatprep.subr.bf16.mxu0 0
    %144 = vmatpush1.bf16.msra.mxu0 %v123
    %145 = vmatprep.subr.bf16.mxu0 0
    %146 = vmatpush1.bf16.msra.mxu0 %v122
    %147 = vmatprep.subr.bf16.mxu0 0
    %148 = vmatpush1.bf16.msra.mxu0 %v121
    %149 = vmatprep.subr.bf16.mxu0 0
    %150 = vmatpush2.bf16.msra.mxu0 0
    %151 = vmatprep.subr.bf16.mxu0 0
    %152 = vmatpush2.bf16.msra.mxu0 0
    %153 = vmatprep.subr.bf16.mxu0 0
    %154 = vmatpush2.bf16.msra.mxu0 0
    %155 = vmatprep.subr.bf16.mxu0 0
    %156 = vmatpush2.bf16.msra.mxu0 0
    %157 = vmatprep.subr.bf16.mxu0 0
    %158 = vmatpush2.bf16.msra.mxu0 0
    %159 = vmatprep.subr.bf16.mxu0 0
    %160 = vmatpush2.bf16.msra.mxu0 0
    %161 = vmatprep.subr.bf16.mxu0 0
    %162 = vmatpush2.bf16.msra.mxu0 0
    %163 = vmatprep.subr.bf16.mxu0 0
    %164 = vmatpush2.bf16.msra.mxu0 0
    %165 = vmatprep.mubr.bf16.mxu0 0
    %166 = vmatmul.mubr.bf16.gmra.mxu0 %v131
    %v167 = vpop.f32.mrf.mxu0
    %v168 = vadd.f32 %v103, %v167
    %v169 = vpop.f32.mrf.mxu0
    %v170 = vpop.f32.mrf.mxu0
    %v171 = vpop.f32.mrf.mxu0
    %172 = vdwg.mxu0
    %v173 = vmax.f32 %v168, 0.0
    %v174 = vpack.c.bf16 %v173, %v173
    %v175 = vld [vmem:[%s5] sm:$0xf]
    %v176 = vld [vmem:[%s5 + $0x4] sm:$0xf]
    %v177 = vld [vmem:[%s5 + $0x8] sm:$0xf]
    %v178 = vld [vmem:[%s5 + $0xc] sm:$0xf]
    %v179 = vld [vmem:[%s5 + $0x10] sm:$0xf]
    %v180 = vld [vmem:[%s5 + $0x14] sm:$0xf]
    %v181 = vld [vmem:[%s6] sm:$0x1]
    %v183 = vlaneseq
    %v184 = vshrl.u32 %v183, 7
    %v185 = vsub.s32 0, %v184
    %v186 = vrot.slane %v181, %v185
    %v194 = vunpack.c.l.b16 %v175
    %v195 = vunpack.c.l.b16 %v176
    %v196 = vunpack.c.l.b16 %v177
    %v197 = vunpack.c.l.b16 %v178
    %v198 = vunpack.c.l.b16 %v179
    %v199 = vunpack.c.l.b16 %v180
    %v200 = vpack.c.b16 %v195, %v194
    %v201 = vpack.c.b16 %v197, %v196
    %v202 = vpack.c.b16 %v199, %v198
    %vm206 = vcmask 392192
    %v208 = vsel %vm206, %v174, 0
    %210 = vmatprep.subr.bf16.mxu0 0
    %211 = vmatpush1.bf16.msra.mxu0 0
    %212 = vmatprep.subr.bf16.mxu0 0
    %213 = vmatpush1.bf16.msra.mxu0 0
    %214 = vmatprep.subr.bf16.mxu0 0
    %215 = vmatpush1.bf16.msra.mxu0 0
    %216 = vmatprep.subr.bf16.mxu0 0
    %217 = vmatpush1.bf16.msra.mxu0 0
    %218 = vmatprep.subr.bf16.mxu0 0
    %219 = vmatpush1.bf16.msra.mxu0 0
    %220 = vmatprep.subr.bf16.mxu0 0
    %221 = vmatpush1.bf16.msra.mxu0 %v202
    %222 = vmatprep.subr.bf16.mxu0 0
    %223 = vmatpush1.bf16.msra.mxu0 %v201
    %224 = vmatprep.subr.bf16.mxu0 0
    %225 = vmatpush1.bf16.msra.mxu0 %v200
    %226 = vmatprep.subr.bf16.mxu0 0
    %227 = vmatpush2.bf16.msra.mxu0 0
    %228 = vmatprep.subr.bf16.mxu0 0
    %229 = vmatpush2.bf16.msra.mxu0 0
    %230 = vmatprep.subr.bf16.mxu0 0
    %231 = vmatpush2.bf16.msra.mxu0 0
    %232 = vmatprep.subr.bf16.mxu0 0
    %233 = vmatpush2.bf16.msra.mxu0 0
    %234 = vmatprep.subr.bf16.mxu0 0
    %235 = vmatpush2.bf16.msra.mxu0 0
    %236 = vmatprep.subr.bf16.mxu0 0
    %237 = vmatpush2.bf16.msra.mxu0 0
    %238 = vmatprep.subr.bf16.mxu0 0
    %239 = vmatpush2.bf16.msra.mxu0 0
    %240 = vmatprep.subr.bf16.mxu0 0
    %241 = vmatpush2.bf16.msra.mxu0 0
    %242 = vmatprep.mubr.bf16.mxu0 0
    %243 = vmatmul.mubr.bf16.gmra.mxu0 %v208
    %v244 = vpop.f32.mrf.mxu0
    %v245 = vadd.f32 %v186, %v244
    %v246 = vpop.f32.mrf.mxu0
    %v247 = vpop.f32.mrf.mxu0
    %v248 = vpop.f32.mrf.mxu0
    %249 = vdwg.mxu0
    %vm250 = vcmask 261120
    %251 = vst.msk [vmem:[#allocation2] sm:$0xff] %vm250, %v245
    // Predicated region
    $region30: #{tpu_custom_call.1} parent=1 // pred_check
      _
    $region31: #{tpu_custom_call.1} parent=1 // pred_check_branch
      %253 = sbr.rel (0) target = $region33
    $region32: #{tpu_custom_call.1} parent=1 // pred_region
      %s255 = ssub.s32 128, 128
      %256 = vsyncadd [#allocation3], %s255
      %s258 = sshll.u32 [#allocation2], 4
      %s259 = int_to_ptr.vmem [resolvable:$true] %s258
      %261 = dma.vmem_to_hbm [thread:$0]  %s259, 128, %s7, [#allocation3]
    $region33: #{tpu_custom_call.1} parent=1 // pred_fallthru
      _
    // Predicated region
    $region34: #{tpu_custom_call.1} parent=1 // pred_check
      _
    $region35: #{tpu_custom_call.1} parent=1 // pred_check_branch
      %263 = sbr.rel (0) target = $region37
    $region36: #{tpu_custom_call.1} parent=1 // pred_region
      %264 = dma.done [#allocation3], 128
    $region37: #{tpu_custom_call.1} parent=1 // pred_fallthru
      _
    %265 = vsyncpa [#allocation3], 1

</llo_original>
